<compile_context>
chip_gen: v6e
topology: v6e:2x2x1
jax: 0.10.0
libtpu: 0.0.40
codegen_flags: <defaults>
</compile_context>

<pallas_src>
import jax
import jax.numpy as jnp
from jax.experimental import pallas as pl
from jax.experimental.pallas import tpu as pltpu


_VMEM_LIMIT_BYTES = 32 * 1024 * 1024    # explicit scoped-VMEM limit (ok on v5e/v6e/v7x)
_TILE_BUDGET_BYTES = 20 * 1024 * 1024   # pipeline buffers + in-kernel f32 temporaries


# ----------------------------------------------------------------------------
# In-kernel math helpers (all f32)
# ----------------------------------------------------------------------------
def _kl_pointwise_f32(p, l):
    """Pointwise KL term: label * (log(label) - log_softmax(pred)), 0 where label==0."""
    m = jnp.max(p, axis=-1, keepdims=True)
    s = p - m
    lse = jnp.log(jnp.sum(jnp.exp(s), axis=-1, keepdims=True))
    log_pred = s - lse
    safe_log_l = jnp.log(jnp.where(l > 0, l, 1.0))
    return jnp.where(l > 0, l * (safe_log_l - log_pred), 0.0)


def _kl_rowsum_f32(p, l):
    """Per-row sum of the pointwise KL term without materializing it.

    sum_c where(l>0, l*(log l - log_pred), 0)
      = sum_c l*log l  -  sum_c l*(pred - m)  +  lse * sum_c l
    (log_pred is finite, so l == 0 entries contribute 0 to every term).
    """
    m = jnp.max(p, axis=-1, keepdims=True)
    s = p - m
    lse = jnp.log(jnp.sum(jnp.exp(s), axis=-1, keepdims=True))
    ent = jnp.sum(jnp.where(l > 0, l * jnp.log(jnp.where(l > 0, l, 1.0)), 0.0),
                  axis=-1, keepdims=True)
    cross = jnp.sum(l * s, axis=-1, keepdims=True)
    lsum = jnp.sum(l, axis=-1, keepdims=True)
    return ent - cross + lse * lsum


# ----------------------------------------------------------------------------
# Kernel bodies
# ----------------------------------------------------------------------------
def _rowsum_kernel(pred_ref, label_ref, rsum_ref):
    rsum_ref[...] = _kl_rowsum_f32(pred_ref[...].astype(jnp.float32),
                                   label_ref[...].astype(jnp.float32))


def _rowsum_elemweight_kernel(pred_ref, label_ref, w_ref, rsum_ref):
    pw = _kl_pointwise_f32(pred_ref[...].astype(jnp.float32),
                           label_ref[...].astype(jnp.float32))
    pw = pw * w_ref[...].astype(jnp.float32)
    rsum_ref[...] = jnp.sum(pw, axis=-1, keepdims=True)


def _elem_kernel(pred_ref, label_ref, out_ref):
    out_ref[...] = _kl_pointwise_f32(
        pred_ref[...].astype(jnp.float32),
        label_ref[...].astype(jnp.float32)).astype(out_ref.dtype)


def _elem_weight_kernel(pred_ref, label_ref, w_ref, out_ref):
    pw = _kl_pointwise_f32(pred_ref[...].astype(jnp.float32),
                           label_ref[...].astype(jnp.float32))
    out_ref[...] = (pw * w_ref[...].astype(jnp.float32)).astype(out_ref.dtype)


# ----------------------------------------------------------------------------
# Tiling helpers
# ----------------------------------------------------------------------------
def _round_up(x, m):
    return ((x + m - 1) // m) * m


def _sublane_multiple(itemsize):
    if itemsize >= 4:
        return 8
    if itemsize == 2:
        return 16
    return 32


def _choose_tile_n(n, c, in_itemsize, extra_in_cols=0,
                   budget_bytes=_TILE_BUDGET_BYTES):
    """Pick the row-tile size (dtype-aware, counts f32 temporaries explicitly)."""
    per_row = 2 * 2 * c * in_itemsize          # pred + label, x2 pipeline buffers
    per_row += 2 * extra_in_cols * 4           # optional weight block, x2 buffers
    per_row += 6 * c * 4                       # in-kernel f32 temporaries
    sub = _sublane_multiple(in_itemsize)
    rows = max(budget_bytes // max(per_row, 1), sub)
    rows = max((rows // sub) * sub, sub)
    rows = min(rows, 4096)
    n_ceil = _round_up(n, sub)
    rows = min(rows, n_ceil)
    # v7x megacore: keep >= 2 grid steps when the problem allows, so
    # dimension_semantics=("parallel",) can shard the grid over both TensorCores.
    half = ((n_ceil // 2) // sub) * sub
    if half >= sub:
        rows = min(rows, half)
    return rows


# ----------------------------------------------------------------------------
# pallas_call wrappers
# ----------------------------------------------------------------------------
def kldiv_pallas_rowsums(pred, label, elem_weight=None):
    """(N, 1) f32 per-sample KL row sums; optional fused (N, C) elementwise weight."""
    n, c = pred.shape
    itemsize = jnp.dtype(pred.dtype).itemsize
    extra_cols = c if elem_weight is not None else 0
    tile_n = _choose_tile_n(n, c, itemsize, extra_in_cols=extra_cols)
    grid = (pl.cdiv(n, tile_n),)

    in_spec = pl.BlockSpec((tile_n, c), lambda i: (i, 0))
    out_spec = pl.BlockSpec((tile_n, 1), lambda i: (i, 0))
    cost = pl.CostEstimate(
        flops=10 * n * c,
        transcendentals=2 * n * c,
        bytes_accessed=2 * n * c * itemsize + extra_cols * n * 4 + n * 4)
    cparams = pltpu.CompilerParams(dimension_semantics=("parallel",),
                                   vmem_limit_bytes=_VMEM_LIMIT_BYTES)
    out_shape = jax.ShapeDtypeStruct((n, 1), jnp.float32)

    if elem_weight is None:
        return pl.pallas_call(
            _rowsum_kernel, out_shape=out_shape, grid=grid,
            in_specs=[in_spec, in_spec], out_specs=out_spec,
            compiler_params=cparams, cost_estimate=cost)(pred, label)

    w = elem_weight.astype(jnp.float32)
    w_spec = pl.BlockSpec((tile_n, c), lambda i: (i, 0))
    return pl.pallas_call(
        _rowsum_elemweight_kernel, out_shape=out_shape, grid=grid,
        in_specs=[in_spec, in_spec, w_spec], out_specs=out_spec,
        compiler_params=cparams, cost_estimate=cost)(pred, label, w)


def kldiv_pallas_elementwise(pred, label, weight=None):
    """Pointwise KL loss, shape exactly (N, C); optional fused (N,1)/(N,C) weight."""
    n, c = pred.shape
    itemsize = jnp.dtype(pred.dtype).itemsize
    out_dtype = jnp.promote_types(pred.dtype, label.dtype)
    if weight is not None:
        out_dtype = jnp.promote_types(out_dtype, jnp.float32)
    extra_cols = 0 if weight is None else weight.shape[1]
    tile_n = _choose_tile_n(n, c, itemsize, extra_in_cols=extra_cols)
    grid = (pl.cdiv(n, tile_n),)

    in_spec = pl.BlockSpec((tile_n, c), lambda i: (i, 0))
    out_spec = pl.BlockSpec((tile_n, c), lambda i: (i, 0))
    out_itemsize = jnp.dtype(out_dtype).itemsize
    cost = pl.CostEstimate(
        flops=10 * n * c,
        transcendentals=2 * n * c,
        bytes_accessed=2 * n * c * itemsize + extra_cols * n * 4
                       + n * c * out_itemsize)
    cparams = pltpu.CompilerParams(dimension_semantics=("parallel",),
                                   vmem_limit_bytes=_VMEM_LIMIT_BYTES)
    out_shape = jax.ShapeDtypeStruct((n, c), out_dtype)

    if weight is None:
        return pl.pallas_call(
            _elem_kernel, out_shape=out_shape, grid=grid,
            in_specs=[in_spec, in_spec], out_specs=out_spec,
            compiler_params=cparams, cost_estimate=cost)(pred, label)

    w = weight.astype(jnp.float32)
    w_spec = pl.BlockSpec((tile_n, weight.shape[1]), lambda i: (i, 0))
    return pl.pallas_call(
        _elem_weight_kernel, out_shape=out_shape, grid=grid,
        in_specs=[in_spec, in_spec, w_spec], out_specs=out_spec,
        compiler_params=cparams, cost_estimate=cost)(pred, label, w)


# ----------------------------------------------------------------------------
# Loss function / module (mmdet-style weight_reduce_loss semantics)
# ----------------------------------------------------------------------------
def kldiv(pred, label, weight=None, reduction='mean', avg_factor=None):
    pred = jnp.asarray(pred)
    label = jnp.asarray(label)
    n, c = pred.shape
    if weight is not None:
        weight = jnp.asarray(weight, dtype=jnp.float32)
        if weight.ndim == 1:
            weight = weight[:, None]            # (N,) -> (N, 1)

    if reduction == 'none':
        # Weight (sample-wise (N,1) or elementwise (N,C)) is fused in-kernel.
        return kldiv_pallas_elementwise(pred, label, weight)

    if reduction not in ('mean', 'sum'):
        raise ValueError(f'unknown reduction {reduction}')

    # Reduce-only path: only (N, 1) per-row sums ever leave the kernel.
    if weight is None:
        loss_sum = jnp.sum(kldiv_pallas_rowsums(pred, label))
    elif weight.shape == (n, 1):
        # Sample-wise weight applied on the tiny (N, 1) row-sum vector.
        loss_sum = jnp.sum(kldiv_pallas_rowsums(pred, label) * weight)
    else:
        # Full (N, C) elementwise weight fused into the reduce kernel.
        loss_sum = jnp.sum(kldiv_pallas_rowsums(pred, label, elem_weight=weight))

    if avg_factor is None:
        if reduction == 'mean':
            return loss_sum / (n * c)
        return loss_sum                          # 'sum'
    else:
        if reduction == 'mean':
            return loss_sum / avg_factor
        raise ValueError('avg_factor can not be used with reduction="sum"')


class KLDIVLoss:
    """JAX/Pallas port of wtisp KLDIVLoss (multi_label=False path)."""

    def __init__(self, multi_label=False, reduction='mean', loss_weight=1.0):
        self.multi_label = multi_label
        self.reduction = reduction
        self.loss_weight = loss_weight
        self.cls_criterion = kldiv

    def __call__(self, cls_score, label, weight=None, avg_factor=None,
                 reduction_override=None, **kwargs):
        assert reduction_override in (None, 'none', 'mean', 'sum')
        reduction = reduction_override if reduction_override else self.reduction
        loss_cls = self.loss_weight * self.cls_criterion(
            cls_score, label, weight, reduction=reduction, avg_factor=avg_factor)
        return loss_cls


# ----------------------------------------------------------------------------
# Self-test
# ----------------------------------------------------------------------------
def _kldiv_reference(pred, label, weight=None, reduction='mean', avg_factor=None):
    logp = jax.nn.log_softmax(pred.astype(jnp.float32), axis=1)
    lbl = label.astype(jnp.float32)
    loss = jnp.where(lbl > 0,
                     lbl * (jnp.log(jnp.where(lbl > 0, lbl, 1.0)) - logp), 0.0)
    if weight is not None:
        w = jnp.asarray(weight, jnp.float32)
        if w.ndim == 1:
            w = w[:, None]
        loss = loss * w
    if avg_factor is None:
        if reduction == 'mean':
            return jnp.mean(loss)
        if reduction == 'sum':
            return jnp.sum(loss)
        return loss
    else:
        if reduction == 'mean':
            return jnp.sum(loss) / avg_factor
        return loss


if __name__ == "__main__":
    key = jax.random.PRNGKey(0)
    k1, k2, k3, k4 = jax.random.split(key, 4)

    # N and C deliberately NOT multiples of 8 / 128: exercises the ragged-tail path.
    N, C = 10, 12
    cls_score = jax.random.normal(k1, (N, C), dtype=jnp.float32)
    label = jax.nn.softmax(jax.random.normal(k2, (N, C), dtype=jnp.float32), axis=1)
    sample_w = jax.random.uniform(k3, (N,), dtype=jnp.float32)
    elem_w = jax.random.uniform(k4, (N, C), dtype=jnp.float32)

    loss_fn = KLDIVLoss(reduction='mean', loss_weight=1.0)

    loss_mean = loss_fn(cls_score, label)
    loss_sum = loss_fn(cls_score, label, reduction_override='sum')
    loss_none = loss_fn(cls_score, label, reduction_override='none')
    loss_wmean = loss_fn(cls_score, label, weight=sample_w)
    loss_wnone = loss_fn(cls_score, label, weight=sample_w, reduction_override='none')
    loss_emean = loss_fn(cls_score, label, weight=elem_w)
    loss_avgf = loss_fn(cls_score, label, avg_factor=3.0)

    jax.block_until_ready((loss_mean, loss_sum, loss_none, loss_wmean,
                           loss_wnone, loss_emean, loss_avgf))

    # Compare against the pure-JAX reference.
    ref_mean = _kldiv_reference(cls_score, label, reduction='mean')
    ref_sum = _kldiv_reference(cls_score, label, reduction='sum')
    ref_none = _kldiv_reference(cls_score, label, reduction='none')
    ref_wmean = _kldiv_reference(cls_score, label, weight=sample_w, reduction='mean')
    ref_wnone = _kldiv_reference(cls_score, label, weight=sample_w, reduction='none')
    ref_emean = _kldiv_reference(cls_score, label, weight=elem_w, reduction='mean')
    ref_avgf = _kldiv_reference(cls_score, label, reduction='mean', avg_factor=3.0)

    assert loss_none.shape == (N, C)
    assert loss_wnone.shape == (N, C)
    assert jnp.allclose(loss_mean, ref_mean, rtol=2e-5, atol=1e-5)
    assert jnp.allclose(loss_sum, ref_sum, rtol=2e-5, atol=1e-5)
    assert jnp.allclose(loss_none, ref_none, rtol=2e-5, atol=1e-5)
    assert jnp.allclose(loss_wmean, ref_wmean, rtol=2e-5, atol=1e-5)
    assert jnp.allclose(loss_wnone, ref_wnone, rtol=2e-5, atol=1e-5)
    assert jnp.allclose(loss_emean, ref_emean, rtol=2e-5, atol=1e-5)
    assert jnp.allclose(loss_avgf, ref_avgf, rtol=2e-5, atol=1e-5)
    assert abs(float(loss_mean) - float(loss_sum) / (N * C)) < 1e-5

    print("KERNEL_OK")
</pallas_src>

<mosaic_0001>
module attributes {stable_mosaic.version = 11 : i64} {
  func.func @_rowsum_kernel(%arg0: i32, %arg1: memref<8x12xf32, #tpu.memory_space<vmem>>, %arg2: memref<8x12xf32, #tpu.memory_space<vmem>>, %arg3: memref<8x1xf32, #tpu.memory_space<vmem>>) attributes {dimension_semantics = [#tpu.dimension_semantics<parallel>], iteration_bounds = array<i64: 2>, scalar_prefetch = 0 : i64, scratch_operands = 0 : i64, tpu.core_type = #tpu.core_type<tc>, window_params = [{transform_indices = @transform_0, window_bounds = array<i64: 8, 12>}, {transform_indices = @transform_1, window_bounds = array<i64: 8, 12>}, {transform_indices = @transform_2, window_bounds = array<i64: 8, 1>}]} {
    %c0 = arith.constant 0 : index
    %c0_0 = arith.constant 0 : index
    %0 = vector.load %arg1[%c0, %c0_0] : memref<8x12xf32, #tpu.memory_space<vmem>>, vector<8x12xf32>
    %c0_1 = arith.constant 0 : index
    %c0_2 = arith.constant 0 : index
    %1 = vector.load %arg2[%c0_1, %c0_2] : memref<8x12xf32, #tpu.memory_space<vmem>>, vector<8x12xf32>
    %cst = arith.constant dense<0xFF800000> : vector<8xf32>
    %2 = vector.multi_reduction <maximumf>, %0, %cst [1] : vector<8x12xf32> to vector<8xf32>
    %3 = vector.shape_cast %2 : vector<8xf32> to vector<8x1xf32>
    %4 = vector.broadcast %3 : vector<8x1xf32> to vector<8x12xf32>
    %5 = arith.subf %0, %4 : vector<8x12xf32>
    %6 = math.exp %5 : vector<8x12xf32>
    %cst_3 = arith.constant dense<0.000000e+00> : vector<8xf32>
    %7 = vector.multi_reduction <add>, %6, %cst_3 [1] : vector<8x12xf32> to vector<8xf32>
    %8 = vector.shape_cast %7 : vector<8xf32> to vector<8x1xf32>
    %9 = math.log %8 : vector<8x1xf32>
    %cst_4 = arith.constant 0.000000e+00 : f32
    %10 = vector.broadcast %cst_4 : f32 to vector<8x12xf32>
    %11 = arith.cmpf ogt, %1, %10 : vector<8x12xf32>
    %cst_5 = arith.constant 0.000000e+00 : f32
    %12 = vector.broadcast %cst_5 : f32 to vector<8x12xf32>
    %13 = arith.cmpf ogt, %1, %12 : vector<8x12xf32>
    %cst_6 = arith.constant 1.000000e+00 : f32
    %14 = vector.broadcast %cst_6 : f32 to vector<8x12xf32>
    %15 = arith.select %13, %1, %14 : vector<8x12xi1>, vector<8x12xf32>
    %16 = math.log %15 : vector<8x12xf32>
    %17 = arith.mulf %1, %16 : vector<8x12xf32>
    %cst_7 = arith.constant 0.000000e+00 : f32
    %18 = vector.broadcast %cst_7 : f32 to vector<8x12xf32>
    %19 = arith.select %11, %17, %18 : vector<8x12xi1>, vector<8x12xf32>
    %cst_8 = arith.constant dense<0.000000e+00> : vector<8xf32>
    %20 = vector.multi_reduction <add>, %19, %cst_8 [1] : vector<8x12xf32> to vector<8xf32>
    %21 = vector.shape_cast %20 : vector<8xf32> to vector<8x1xf32>
    %22 = arith.mulf %1, %5 : vector<8x12xf32>
    %cst_9 = arith.constant dense<0.000000e+00> : vector<8xf32>
    %23 = vector.multi_reduction <add>, %22, %cst_9 [1] : vector<8x12xf32> to vector<8xf32>
    %24 = vector.shape_cast %23 : vector<8xf32> to vector<8x1xf32>
    %cst_10 = arith.constant dense<0.000000e+00> : vector<8xf32>
    %25 = vector.multi_reduction <add>, %1, %cst_10 [1] : vector<8x12xf32> to vector<8xf32>
    %26 = vector.shape_cast %25 : vector<8xf32> to vector<8x1xf32>
    %27 = arith.subf %21, %24 : vector<8x1xf32>
    %28 = arith.mulf %9, %26 : vector<8x1xf32>
    %29 = arith.addf %27, %28 : vector<8x1xf32>
    %c0_11 = arith.constant 0 : index
    %c0_12 = arith.constant 0 : index
    %30 = vector.load %arg3[%c0_11, %c0_12] : memref<8x1xf32, #tpu.memory_space<vmem>>, vector<8x1xf32>
    tpu.vector_store %arg3[%c0_11, %c0_12], %29 {strides = array<i32>} : memref<8x1xf32, #tpu.memory_space<vmem>>, vector<8x1xf32>,
    return
  }
  func.func @transform_0(%arg0: i32) -> (i32, i32) {
    %c0_i32 = arith.constant 0 : i32
    %c0_i32_0 = arith.constant 0 : i32
    return %arg0, %c0_i32 : i32, i32
  }
  func.func @transform_1(%arg0: i32) -> (i32, i32) {
    %c0_i32 = arith.constant 0 : i32
    %c0_i32_0 = arith.constant 0 : i32
    return %arg0, %c0_i32 : i32, i32
  }
  func.func @transform_2(%arg0: i32) -> (i32, i32) {
    %c0_i32 = arith.constant 0 : i32
    %c0_i32_0 = arith.constant 0 : i32
    return %arg0, %c0_i32 : i32, i32
  }
}

</mosaic_0001>

<llo_original>
// kernel: tpu_custom_call.1
$region0: #{tpu_custom_call.1}
  #allocation0 [shape = 'u32[]', space=smem, size = 0x4, offset = 0x4, fixed_abs, tag = 'smem constant byte address 0x4 - core index']
  #allocation1 [shape = 'u32[144,128]{1,0:T(1,128)}', space=vmem, size = 0x12000, scoped, tag = 'internal scratch']
  %s0 = inlined_call_operand.hbm [shape: f32[10,12], index: 0, kind: input, shape index: {}]
  %s1 = inlined_call_operand.hbm [shape: f32[10,12], index: 1, kind: input, shape index: {}]
  %s2 = inlined_call_operand.vmem [shape: f32[10,1], index: 2, kind: output, shape index: {}]
  %s3 = sld [smem:[#allocation0]]
  $region49: #{tpu_custom_call.1} parent=0
    _
  %s5 = ssub.s32 1, %s3
  %s6 = scalar_select 0, %s5, %s3
  $region1: #{tpu_custom_call.1} parent=0
    #allocation2 [shape = 'u8[8192]{0}', space=vmem, size = 0x2000, scoped, tag = 'input window, operand 0']
    #allocation3 [shape = 's32[2]{0}', space=sflag, size = 0x8, scoped, tag = 'scoped memory for tpu_custom_call.1']
    #allocation4 [shape = 'u8[8192]{0}', space=vmem, size = 0x2000, scoped, tag = 'input window, operand 1']
    #allocation5 [shape = 's32[2]{0}', space=sflag, size = 0x8, scoped, tag = 'scoped memory for tpu_custom_call.1']
    %7 = vsyncpa [#allocation3], 0
    %s8 = scalar_lea.sflag [#allocation3], 1
    %9 = vsyncpa %s8, 0
    %10 = vsyncpa [#allocation5], 0
    %s11 = scalar_lea.sflag [#allocation5], 1
    %12 = vsyncpa %s11, 0
    loop: start=0, step=1, limit=4
    $region2: #{tpu_custom_call.1} parent=1 // loop_pre_header
      _
    $region3: #{tpu_custom_call.1} parent=1 // loop_header
      %s14 = sphi 0, %s18
      %p15 = scmp.ge.s32.totalorder %s14, 4
      %s24 = sphi 0, %s26
      %s27 = sphi 0, %s24
      %s28 = sphi 0, %s27
      %s44 = sphi 0, %s28
      %s50 = sphi 0, %s52
      %s53 = sphi 0, %s50
      %s54 = sphi 0, %s53
      %s70 = sphi 0, %s54
      %s76 = sphi 0, %s78
      %s79 = sphi 0, %s76
      %s80 = sphi 0, %s79
      %s96 = sphi 0, %s80
    $region4: #{tpu_custom_call.1} parent=1 // loop_header_branch
      %17 = sbr.rel (%p15) target = $region8
    $region5: #{tpu_custom_call.1} parent=1 // loop_body
      %s19 = ssub.s32 %s14, 1
      %s20 = ssub.s32 %s14, 2
      %s21 = sadd.s32 %s14, 1
      %s22 = ssub.s32 %s14, %s21
      %p23 = scmp.eq.s32.totalorder %s22, 0
      %s25 = sadd.s32 %s24, 1
      %s26 = scalar_select %p23, %s24, %s25
      %p29 = pneg %p23
      %p30 = scmp.eq.s32.totalorder %s14, 1
      %p31 = por %p29, %p30
      %p32 = scmp.ne.s32.totalorder %s24, %s27
      %p33 = scmp.eq.s32.totalorder %s14, 0
      %p34 = por %p32, %p33
      %p35 = scmp.ne.s32.totalorder %s24, %s27
      %p36 = scmp.eq.s32.totalorder %s19, 1
      %p37 = por %p35, %p36
      %p38 = scmp.ne.s32.totalorder %s27, %s28
      %p39 = scmp.eq.s32.totalorder %s19, 0
      %p40 = por %p38, %p39
      %p41 = scmp.ne.s32.totalorder %s27, %s28
      %p42 = scmp.eq.s32.totalorder %s20, 1
      %p43 = por %p41, %p42
      %p45 = scmp.ne.s32.totalorder %s28, %s44
      %p46 = scmp.eq.s32.totalorder %s20, 0
      %p47 = por %p45, %p46
      %s48 = ssub.s32 %s14, %s21
      %p49 = scmp.eq.s32.totalorder %s48, 0
      %s51 = sadd.s32 %s50, 1
      %s52 = scalar_select %p49, %s50, %s51
      %p55 = pneg %p49
      %p56 = scmp.eq.s32.totalorder %s14, 1
      %p57 = por %p55, %p56
      %p58 = scmp.ne.s32.totalorder %s50, %s53
      %p59 = scmp.eq.s32.totalorder %s14, 0
      %p60 = por %p58, %p59
      %p61 = scmp.ne.s32.totalorder %s50, %s53
      %p62 = scmp.eq.s32.totalorder %s19, 1
      %p63 = por %p61, %p62
      %p64 = scmp.ne.s32.totalorder %s53, %s54
      %p65 = scmp.eq.s32.totalorder %s19, 0
      %p66 = por %p64, %p65
      %p67 = scmp.ne.s32.totalorder %s53, %s54
      %p68 = scmp.eq.s32.totalorder %s20, 1
      %p69 = por %p67, %p68
      %p71 = scmp.ne.s32.totalorder %s54, %s70
      %p72 = scmp.eq.s32.totalorder %s20, 0
      %p73 = por %p71, %p72
      %s74 = ssub.s32 %s14, %s21
      %p75 = scmp.eq.s32.totalorder %s74, 0
      %s77 = sadd.s32 %s76, 1
      %s78 = scalar_select %p75, %s76, %s77
      %p81 = pneg %p75
      %p82 = scmp.eq.s32.totalorder %s14, 1
      %p83 = por %p81, %p82
      %p84 = scmp.ne.s32.totalorder %s76, %s79
      %p85 = scmp.eq.s32.totalorder %s14, 0
      %p86 = por %p84, %p85
      %p87 = scmp.ne.s32.totalorder %s76, %s79
      %p88 = scmp.eq.s32.totalorder %s19, 1
      %p89 = por %p87, %p88
      %p90 = scmp.ne.s32.totalorder %s79, %s80
      %p91 = scmp.eq.s32.totalorder %s19, 0
      %p92 = por %p90, %p91
      %p93 = scmp.ne.s32.totalorder %s79, %s80
      %p94 = scmp.eq.s32.totalorder %s20, 1
      %p95 = por %p93, %p94
      %p97 = scmp.ne.s32.totalorder %s80, %s96
      %p98 = scmp.eq.s32.totalorder %s20, 0
      %p99 = por %p97, %p98
      %p100 = scmp.le.s32.totalorder 1, %s14
      %p101 = scmp.lt.s32.totalorder %s14, 3
      %p102 = pnand %p100, %p101
      %p103 = pneg %p102
      // Predicated region
      $region9: #{tpu_custom_call.1} parent=5 // pred_check
        _
      $region10: #{tpu_custom_call.1} parent=5 // pred_check_branch
        %105 = sbr.rel (%p102) target = $region12
      $region11: #{tpu_custom_call.1} parent=5 // pred_region
        %s106 = ssub.s32 %s14, 1
      $region12: #{tpu_custom_call.1} parent=5 // pred_fallthru
        _
      %p107 = scmp.lt.s32.totalorder %s14, 2
      // Predicated region
      $region13: #{tpu_custom_call.1} parent=5 // pred_check
        %p108 = pneg %p107
      $region14: #{tpu_custom_call.1} parent=5 // pred_check_branch
        %110 = sbr.rel (%p108) target = $region16
      $region15: #{tpu_custom_call.1} parent=5 // pred_region
        // Predicated region
        $region17: #{tpu_custom_call.1} parent=15 // pred_check
          %p111 = pneg %p34
        $region18: #{tpu_custom_call.1} parent=15 // pred_check_branch
          %113 = sbr.rel (%p111) target = $region20
        $region19: #{tpu_custom_call.1} parent=15 // pred_region
          %s114 = sand.u32 %s24, 1
          %s115 = scalar_lea.sflag [#allocation3], %s114
          %s116 = sand.u32 %s24, 1
          %s117 = smul.addr %s116, 8
          %s118 = scalar_lea.vmem [#allocation2], %s117
          %s120 = ssub.s32 128, 128
          %121 = vsyncadd %s115, %s120
          %s122 = smul.addr %s14, 128
          %s123 = scalar_lea.hbm %s0, %s122
          %s125 = sshll.u32 %s118, 4
          %s126 = int_to_ptr.vmem [resolvable:$true] %s125
          %128 = dma.hbm_to_vmem [thread:$0]  %s123, 128, %s126, %s115
        $region20: #{tpu_custom_call.1} parent=15 // pred_fallthru
          _
        // Predicated region
        $region21: #{tpu_custom_call.1} parent=15 // pred_check
          %p129 = pneg %p60
        $region22: #{tpu_custom_call.1} parent=15 // pred_check_branch
          %131 = sbr.rel (%p129) target = $region24
        $region23: #{tpu_custom_call.1} parent=15 // pred_region
          %s132 = sand.u32 %s50, 1
          %s133 = scalar_lea.sflag [#allocation5], %s132
          %s134 = sand.u32 %s50, 1
          %s135 = smul.addr %s134, 8
          %s136 = scalar_lea.vmem [#allocation4], %s135
          %s138 = ssub.s32 128, 128
          %139 = vsyncadd %s133, %s138
          %s140 = smul.addr %s14, 128
          %s141 = scalar_lea.hbm %s1, %s140
          %s143 = sshll.u32 %s136, 4
          %s144 = int_to_ptr.vmem [resolvable:$true] %s143
          %146 = dma.hbm_to_vmem [thread:$0]  %s141, 128, %s144, %s133
        $region24: #{tpu_custom_call.1} parent=15 // pred_fallthru
          _
      $region16: #{tpu_custom_call.1} parent=5 // pred_fallthru
        _
      %p147 = scmp.le.s32.totalorder 1, %s14
      %p148 = scmp.lt.s32.totalorder %s14, 3
      %p149 = pnand %p147, %p148
      %p150 = pneg %p149
      // Predicated region
      $region25: #{tpu_custom_call.1} parent=5 // pred_check
        _
      $region26: #{tpu_custom_call.1} parent=5 // pred_check_branch
        %152 = sbr.rel (%p149) target = $region28
      $region27: #{tpu_custom_call.1} parent=5 // pred_region
        %s153 = ssub.s32 %s14, 1
        %s154 = sand.u32 %s27, 1
        %s155 = scalar_lea.sflag [#allocation3], %s154
        %s156 = sand.u32 %s27, 1
        %s157 = smul.addr %s156, 8
        %s158 = scalar_lea.vmem [#allocation2], %s157
        // Predicated region
        $region29: #{tpu_custom_call.1} parent=27 // pred_check
          %p159 = pneg %p40
        $region30: #{tpu_custom_call.1} parent=27 // pred_check_branch
          %161 = sbr.rel (%p159) target = $region32
        $region31: #{tpu_custom_call.1} parent=27 // pred_region
          %162 = dma.done %s155, 128
        $region32: #{tpu_custom_call.1} parent=27 // pred_fallthru
          _
        %s163 = sand.u32 %s53, 1
        %s164 = scalar_lea.sflag [#allocation5], %s163
        %s165 = sand.u32 %s53, 1
        %s166 = smul.addr %s165, 8
        %s167 = scalar_lea.vmem [#allocation4], %s166
        // Predicated region
        $region33: #{tpu_custom_call.1} parent=27 // pred_check
          %p168 = pneg %p66
        $region34: #{tpu_custom_call.1} parent=27 // pred_check_branch
          %170 = sbr.rel (%p168) target = $region36
        $region35: #{tpu_custom_call.1} parent=27 // pred_region
          %171 = dma.done %s164, 128
        $region36: #{tpu_custom_call.1} parent=27 // pred_fallthru
          _
        %s172 = sand.u32 %s27, 1
        %s173 = scalar_lea.sflag [#allocation3], %s172
        %s174 = sand.u32 %s27, 1
        %s175 = smul.addr %s174, 8
        %s176 = scalar_lea.vmem [#allocation2], %s175
        %p177 = pneg %p40
        %p178 = pneg %p37
        %s179 = sand.u32 %s53, 1
        %s180 = scalar_lea.sflag [#allocation5], %s179
        %s181 = sand.u32 %s53, 1
        %s182 = smul.addr %s181, 8
        %s183 = scalar_lea.vmem [#allocation4], %s182
        %p184 = pneg %p66
        %p185 = pneg %p63
        %p186 = pneg %p92
        %p187 = pneg %p89
        %p188 = scmp.lt.s32.totalorder %s19, 1
        %s189 = scalar_select %p188, %s19, 1
        %s190 = smul.addr %s189, 8
        %s191 = scalar_lea.vmem %s2, %s190
        %p192 = scmp.lt.s32.totalorder %s19, 1
        %s193 = scalar_select %p192, %s19, 1
        %s194 = smul.addr %s193, 8
        %s195 = scalar_lea.vmem %s2, %s194
        %v196 = vld [vmem:[%s158] sm:$0xff]
        %v197 = vld [vmem:[%s167] sm:$0xff]
        %vm198 = vcmask 97280
        %v199 = vsel %vm198, %v196, -inf
        %200 = vmax.xlane.f32.xlu0 %v199
        %v201 = vpop.xlane.xlu0 %200
        %v202 = vsub.f32 %v196, %v201
        %v203 = vmul.f32 %v202, 1.442695
        %v204 = vpow.pop %v203
        %v205 = vsel %vm198, %v204, 0.0
        %206 = vadd.xlane.f32.xlu0 %v205
        %v207 = vpop.xlane.xlu0 %206
        %v208 = vlog2.pop %v207
        %v209 = vmul.f32 %v208, 0.6931472
        %vm210 = vcmp.gt.f32.partialorder %v197, 0.0
        %v211 = vsel %vm210, %v197, 1.0
        %v212 = vlog2.pop %v211
        %v213 = vmul.f32 %v212, 0.6931472
        %v214 = vmul.f32 %v197, %v213
        %v215 = vsel %vm210, %v214, 0.0
        %v216 = vsel %vm198, %v215, 0.0
        %217 = vadd.xlane.f32.xlu0 %v216
        %v218 = vpop.xlane.xlu0 %217
        %v219 = vmul.f32 %v197, %v202
        %v220 = vsel %vm198, %v219, 0.0
        %221 = vadd.xlane.f32.xlu0 %v220
        %v222 = vpop.xlane.xlu0 %221
        %v223 = vsel %vm198, %v197, 0.0
        %224 = vadd.xlane.f32.xlu0 %v223
        %v225 = vpop.xlane.xlu0 %224
        %v226 = vsub.f32 %v218, %v222
        %v227 = vmul.f32 %v209, %v225
        %v228 = vadd.f32 %v226, %v227
        %vm229 = vcmask 7168
        %230 = vst.msk [vmem:[%s195] sm:$0xff] %vm229, %v228
        %p231 = scmp.lt.s32.totalorder %s19, 1
        %s232 = scalar_select %p231, %s19, 1
        %s233 = smul.addr %s232, 8
        %s234 = scalar_lea.vmem %s2, %s233
        // Predicated region
        $region37: #{tpu_custom_call.1} parent=27 // pred_check
          %p235 = pneg %p89
        $region38: #{tpu_custom_call.1} parent=27 // pred_check_branch
          %237 = sbr.rel (%p235) target = $region40
        $region39: #{tpu_custom_call.1} parent=27 // pred_region
          _
        $region40: #{tpu_custom_call.1} parent=27 // pred_fallthru
          _
      $region28: #{tpu_custom_call.1} parent=5 // pred_fallthru
        _
      %p238 = scmp.le.s32.totalorder 2, %s14
      // Predicated region
      $region41: #{tpu_custom_call.1} parent=5 // pred_check
        %p239 = pneg %p238
      $region42: #{tpu_custom_call.1} parent=5 // pred_check_branch
        %241 = sbr.rel (%p239) target = $region44
      $region43: #{tpu_custom_call.1} parent=5 // pred_region
        %s242 = ssub.s32 %s14, 2
        // Predicated region
        $region45: #{tpu_custom_call.1} parent=43 // pred_check
          %p243 = pneg %p95
        $region46: #{tpu_custom_call.1} parent=43 // pred_check_branch
          %245 = sbr.rel (%p243) target = $region48
        $region47: #{tpu_custom_call.1} parent=43 // pred_region
          %p246 = scmp.lt.s32.totalorder %s20, 1
          %s247 = scalar_select %p246, %s20, 1
          %s248 = smul.addr %s247, 8
          %s249 = scalar_lea.vmem %s2, %s248
        $region48: #{tpu_custom_call.1} parent=43 // pred_fallthru
          _
      $region44: #{tpu_custom_call.1} parent=5 // pred_fallthru
        _
    $region6: #{tpu_custom_call.1} parent=1 // loop_footer
      %s18 = sadd.s32 1, %s14
    $region7: #{tpu_custom_call.1} parent=1 // loop_footer_branch
      %13 = sbr.rel target = $region3
    $region8: #{tpu_custom_call.1} parent=1 // loop_exit
      _
    %250 = vsyncpa [#allocation3], 1
    %s251 = scalar_lea.sflag [#allocation3], 1
    %252 = vsyncpa %s251, 1
    %253 = vsyncpa [#allocation5], 1
    %s254 = scalar_lea.sflag [#allocation5], 1
    %255 = vsyncpa %s254, 1

</llo_original>
